<compile_context>
chip_gen: v5e
topology: v5e:2x2
jax: 0.10.0
libtpu: 0.0.40
codegen_flags: <defaults>
</compile_context>

<pallas_src>
import jax
import jax.numpy as jnp
from jax import lax
from jax.experimental import pallas as pl
from jax.experimental.pallas import tpu as pltpu

_LANE = 128
_MAX_BLOCK_BYTES = 4 * 1024 * 1024       # per-input block (4 MiB)
_VMEM_LIMIT_BYTES = 40 * 1024 * 1024     # scoped VMEM cap; < v7x 64 MiB phys
_SMALL_N = 1 << 18                       # below this, fused XLA wins


def _round_down(x, m):
    return (x // m) * m


def _make_mse_partial_kernel(block_rows, acc_rows, total_rows, num_blocks,
                             blocks_per_core, needs_mask):
    """Per-core partial sum of squared differences over (block_rows, 128) tiles.

    Accumulates into an (acc_rows, 128) VMEM slab (VPU adds only, 8+
    independent chains); the cross-lane reduce to a single scalar runs once in
    the finish block (XLU, free slot).
    """
    groups = block_rows // acc_rows

    def _fold(sq):
        if groups == 1:
            return sq
        return jnp.sum(sq.reshape(groups, acc_rows, _LANE), axis=0)

    def kernel(p_ref, t_ref, o_ref, acc_ref):
        i = pl.program_id(1)

        @pl.when(i == 0)
        def _init():
            acc_ref[...] = jnp.zeros_like(acc_ref)

        d = p_ref[...].astype(jnp.float32) - t_ref[...].astype(jnp.float32)
        sq = d * d

        if needs_mask:
            # Only the LAST logical block is ragged; gate the iota/where work
            # onto it and keep an unmasked fast path for full blocks.
            blk = pl.program_id(0) * blocks_per_core + i
            is_partial = blk == num_blocks - 1

            @pl.when(jnp.logical_not(is_partial))
            def _full():
                acc_ref[...] += _fold(sq)

            @pl.when(is_partial)
            def _partial():
                row_ids = blk * block_rows + lax.broadcasted_iota(
                    jnp.int32, (block_rows, _LANE), 0)
                acc_ref[...] += _fold(jnp.where(row_ids < total_rows, sq, 0.0))
        else:
            acc_ref[...] += _fold(sq)

        @pl.when(i == pl.num_programs(1) - 1)
        def _finish():
            col = jnp.sum(acc_ref[...], axis=0, keepdims=True)   # (1, LANE)
            o_ref[...] = jnp.sum(col, axis=1, keepdims=True)     # (1, 1)

    return kernel


def sigmoid_mae_loss(pred, target, *, force_pallas=False):
    """Pallas implementation of SigmoidMAELoss.forward == MSE(pred, target)."""
    assert pred.shape == target.shape, (pred.shape, target.shape)
    n = pred.size

    # Small-n fast path: launch + pipeline prologue dominates a Pallas call.
    if n < _SMALL_N and not force_pallas:
        d = pred.astype(jnp.float32) - target.astype(jnp.float32)
        return jnp.mean(d * d)

    p_flat = pred.reshape(-1)
    t_flat = target.reshape(-1)

    # Divisible prefix handled by the kernel; ragged tail (< 1024 elements)
    # handled in plain JAX -- no zero-padded copy of the inputs.
    n_main = _round_down(n, 8 * _LANE)

    sq_sum = jnp.float32(0.0)
    if n_main > 0:
        rows = n_main // _LANE                       # multiple of 8
        itemsize = pred.dtype.itemsize
        max_rows = max(8, _round_down(_MAX_BLOCK_BYTES // (_LANE * itemsize), 8))
        block_rows = min(max_rows, rows)             # multiple of 8
        num_blocks = pl.cdiv(rows, block_rows)
        # 2-way split only when it is free (clean halves: no overhang block,
        # no extra masking). Harmless serial loop on single-TC chips.
        n_cores = 2 if (num_blocks >= 2 and num_blocks % 2 == 0) else 1
        blocks_per_core = num_blocks // n_cores
        needs_mask = (rows % block_rows) != 0
        acc_rows = 64 if block_rows % 64 == 0 else 8

        ragged = n_main < n
        p2 = (p_flat[:n_main] if ragged else p_flat).reshape(rows, _LANE)
        t2 = (t_flat[:n_main] if ragged else t_flat).reshape(rows, _LANE)

        def in_map(c, i):
            return (c * blocks_per_core + i, 0)

        kernel = _make_mse_partial_kernel(
            block_rows, acc_rows, rows, num_blocks, blocks_per_core, needs_mask)

        partials = pl.pallas_call(
            kernel,
            out_shape=jax.ShapeDtypeStruct((n_cores, 1, 1), jnp.float32),
            grid=(n_cores, blocks_per_core),
            in_specs=[
                pl.BlockSpec((block_rows, _LANE), in_map),
                pl.BlockSpec((block_rows, _LANE), in_map),
            ],
            out_specs=pl.BlockSpec((None, 1, 1), lambda c, i: (c, 0, 0)),
            scratch_shapes=[pltpu.VMEM((acc_rows, _LANE), jnp.float32)],
            compiler_params=pltpu.CompilerParams(
                dimension_semantics=("parallel", "arbitrary"),
                vmem_limit_bytes=_VMEM_LIMIT_BYTES,
                # Let XLA fuse the ragged prefix slice into the call instead
                # of materializing a copy of both inputs.
                allow_input_fusion=[True, True] if ragged else None),
            cost_estimate=pl.CostEstimate(
                flops=3 * n_main,
                transcendentals=0,
                bytes_accessed=2 * n_main * itemsize + n_cores * 4),
        )(p2, t2)
        sq_sum = jnp.sum(partials)

    if n_main < n:
        dt = (p_flat[n_main:].astype(jnp.float32)
              - t_flat[n_main:].astype(jnp.float32))
        sq_sum = sq_sum + jnp.sum(dt * dt)

    # Mean over the ORIGINAL element count.
    return sq_sum / jnp.float32(n)


if __name__ == "__main__":
    key = jax.random.PRNGKey(0)
    k1, k2, k3, k4, k5, k6 = jax.random.split(key, 6)

    # 1) Small NCHW-shaped inputs consistent with the module's forward,
    #    forced through the Pallas kernel path.
    pred = jax.random.normal(k1, (2, 4, 16, 16), dtype=jnp.float32)
    target = jax.random.normal(k2, (2, 4, 16, 16), dtype=jnp.float32)
    loss = sigmoid_mae_loss(pred, target, force_pallas=True)
    jax.block_until_ready(loss)
    ref = jnp.mean((pred - target) ** 2)
    assert jnp.allclose(loss, ref, rtol=1e-6, atol=1e-6), (loss, ref)

    # 2) Small ragged element count: exercises the XLA fast path.
    p_r = jax.random.normal(k3, (3, 5, 7, 11), dtype=jnp.float32)
    t_r = jax.random.normal(k4, (3, 5, 7, 11), dtype=jnp.float32)
    loss_r = sigmoid_mae_loss(p_r, t_r)
    jax.block_until_ready(loss_r)
    ref_r = jnp.mean((p_r - t_r) ** 2)
    assert jnp.allclose(loss_r, ref_r, rtol=1e-6, atol=1e-6), (loss_r, ref_r)

    # 3) Larger ragged input: multi-block, 2-way split, masked boundary block
    #    and the plain-JAX tail (1049637 = 8200*128 + 37).
    p_b = jax.random.normal(k5, (1049637,), dtype=jnp.float32)
    t_b = jax.random.normal(k6, (1049637,), dtype=jnp.float32)
    loss_b = sigmoid_mae_loss(p_b, t_b)
    jax.block_until_ready(loss_b)
    ref_b = jnp.mean((p_b - t_b) ** 2)
    assert jnp.allclose(loss_b, ref_b, rtol=1e-4, atol=1e-6), (loss_b, ref_b)

    print("KERNEL_OK")
</pallas_src>

<mosaic_0001>
module attributes {stable_mosaic.version = 11 : i64} {
  func.func @kernel(%arg0: i32, %arg1: i32, %arg2: memref<16x128xf32, #tpu.memory_space<vmem>>, %arg3: memref<16x128xf32, #tpu.memory_space<vmem>>, %arg4: memref<1x1x1xf32, #tpu.memory_space<vmem>>, %arg5: memref<8x128xf32, #tpu.memory_space<vmem>>) attributes {dimension_semantics = [#tpu.dimension_semantics<parallel>, #tpu.dimension_semantics<arbitrary>], iteration_bounds = array<i64: 1, 1>, scalar_prefetch = 0 : i64, scratch_operands = 1 : i64, tpu.core_type = #tpu.core_type<tc>, window_params = [{transform_indices = @transform_0, window_bounds = array<i64: 16, 128>}, {transform_indices = @transform_1, window_bounds = array<i64: 16, 128>}, {transform_indices = @transform_2, window_bounds = array<i64: 1, 1, 1>}]} {
    %c0_i32 = arith.constant 0 : i32
    %0 = arith.cmpi eq, %arg1, %c0_i32 : i32
    %1 = arith.extui %0 : i1 to i32
    %c0_i32_0 = arith.constant 0 : i32
    %2 = arith.cmpi ne, %1, %c0_i32_0 : i32
    scf.if %2 {
      %cst_10 = arith.constant 0.000000e+00 : f32
      %15 = vector.broadcast %cst_10 : f32 to vector<8x128xf32>
      %c0_11 = arith.constant 0 : index
      %c0_12 = arith.constant 0 : index
      %16 = vector.load %arg5[%c0_11, %c0_12] : memref<8x128xf32, #tpu.memory_space<vmem>>, vector<8x128xf32>
      tpu.vector_store %arg5[%c0_11, %c0_12], %15 {strides = array<i32>} : memref<8x128xf32, #tpu.memory_space<vmem>>, vector<8x128xf32>,
    } else {
    }
    %c0 = arith.constant 0 : index
    %c0_1 = arith.constant 0 : index
    %3 = vector.load %arg2[%c0, %c0_1] : memref<16x128xf32, #tpu.memory_space<vmem>>, vector<16x128xf32>
    %c0_2 = arith.constant 0 : index
    %c0_3 = arith.constant 0 : index
    %4 = vector.load %arg3[%c0_2, %c0_3] : memref<16x128xf32, #tpu.memory_space<vmem>>, vector<16x128xf32>
    %5 = arith.subf %3, %4 : vector<16x128xf32>
    %6 = arith.mulf %5, %5 : vector<16x128xf32>
    %c0_4 = arith.constant 0 : index
    %c0_5 = arith.constant 0 : index
    %7 = vector.load %arg5[%c0_4, %c0_5] : memref<8x128xf32, #tpu.memory_space<vmem>>, vector<8x128xf32>
    %8 = vector.shape_cast %6 : vector<16x128xf32> to vector<2x8x128xf32>
    %cst = arith.constant dense<0.000000e+00> : vector<8x128xf32>
    %9 = vector.multi_reduction <add>, %8, %cst [0] : vector<2x8x128xf32> to vector<8x128xf32>
    %10 = arith.addf %7, %9 : vector<8x128xf32>
    %c0_6 = arith.constant 0 : index
    %c0_7 = arith.constant 0 : index
    %11 = vector.load %arg5[%c0_6, %c0_7] : memref<8x128xf32, #tpu.memory_space<vmem>>, vector<8x128xf32>
    tpu.vector_store %arg5[%c0_6, %c0_7], %10 {strides = array<i32>} : memref<8x128xf32, #tpu.memory_space<vmem>>, vector<8x128xf32>,
    %c0_i32_8 = arith.constant 0 : i32
    %12 = arith.cmpi eq, %arg1, %c0_i32_8 : i32
    %13 = arith.extui %12 : i1 to i32
    %c0_i32_9 = arith.constant 0 : i32
    %14 = arith.cmpi ne, %13, %c0_i32_9 : i32
    scf.if %14 {
      %c0_10 = arith.constant 0 : index
      %c0_11 = arith.constant 0 : index
      %15 = vector.load %arg5[%c0_10, %c0_11] : memref<8x128xf32, #tpu.memory_space<vmem>>, vector<8x128xf32>
      %cst_12 = arith.constant dense<0.000000e+00> : vector<128xf32>
      %16 = vector.multi_reduction <add>, %15, %cst_12 [0] : vector<8x128xf32> to vector<128xf32>
      %17 = vector.shape_cast %16 : vector<128xf32> to vector<1x128xf32>
      %cst_13 = arith.constant dense<0.000000e+00> : vector<1xf32>
      %18 = vector.multi_reduction <add>, %17, %cst_13 [1] : vector<1x128xf32> to vector<1xf32>
      %19 = vector.shape_cast %18 : vector<1xf32> to vector<1x1xf32>
      %c0_14 = arith.constant 0 : index
      %c0_15 = arith.constant 0 : index
      %c0_16 = arith.constant 0 : index
      %20 = vector.load %arg4[%c0_14, %c0_15, %c0_16] : memref<1x1x1xf32, #tpu.memory_space<vmem>>, vector<1x1x1xf32>
      %21 = vector.shape_cast %20 : vector<1x1x1xf32> to vector<1x1xf32>
      %22 = vector.shape_cast %19 : vector<1x1xf32> to vector<1x1x1xf32>
      tpu.vector_store %arg4[%c0_14, %c0_15, %c0_16], %22 {strides = array<i32>} : memref<1x1x1xf32, #tpu.memory_space<vmem>>, vector<1x1x1xf32>,
    } else {
    }
    return
  }
  func.func @transform_0(%arg0: i32, %arg1: i32) -> (i32, i32) {
    %c1_i32 = arith.constant 1 : i32
    %0 = arith.muli %arg0, %c1_i32 : i32
    %1 = arith.addi %0, %arg1 : i32
    %c0_i32 = arith.constant 0 : i32
    %c0_i32_0 = arith.constant 0 : i32
    return %1, %c0_i32 : i32, i32
  }
  func.func @transform_1(%arg0: i32, %arg1: i32) -> (i32, i32) {
    %c1_i32 = arith.constant 1 : i32
    %0 = arith.muli %arg0, %c1_i32 : i32
    %1 = arith.addi %0, %arg1 : i32
    %c0_i32 = arith.constant 0 : i32
    %c0_i32_0 = arith.constant 0 : i32
    return %1, %c0_i32 : i32, i32
  }
  func.func @transform_2(%arg0: i32, %arg1: i32) -> (i32, i32, i32) {
    %c0_i32 = arith.constant 0 : i32
    %c0_i32_0 = arith.constant 0 : i32
    %c0_i32_1 = arith.constant 0 : i32
    return %arg0, %c0_i32, %c0_i32_0 : i32, i32, i32
  }
}

</mosaic_0001>

<llo_original>
// kernel: tpu_custom_call.1
$region0: #{tpu_custom_call.1}
  #allocation0 [shape = 'u32[]', space=smem, size = 0x4, offset = 0x4, fixed_abs, tag = 'smem constant byte address 0x4 - core index']
  #allocation1 [shape = 'u32[72,128]{1,0:T(1,128)}', space=vmem, size = 0x9000, scoped, tag = 'internal scratch']
  #allocation2 [shape = 'f32[8,128]{1,0:T(8,128)}', space=vmem, size = 0x1000, scoped, tag = 'scratch operand']
  %s0 = inlined_call_operand.hbm [shape: f32[16,128], index: 0, kind: input, shape index: {}]
  %s1 = inlined_call_operand.hbm [shape: f32[16,128], index: 1, kind: input, shape index: {}]
  %s2 = inlined_call_operand.hbm [shape: f32[1,1,1], index: 2, kind: output, shape index: {}]
  %s3 = sld [smem:[#allocation0]]
  $region34: #{tpu_custom_call.1} parent=0
    _
  %s5 = ssub.s32 1, %s3
  %s6 = scalar_select 0, %s5, %s3
  $region1: #{tpu_custom_call.1} parent=0
    #allocation3 [shape = 'u8[8192]{0}', space=vmem, size = 0x2000, scoped, tag = 'input window, operand 0, single buffered']
    #allocation4 [shape = 's32[1]{0}', space=sflag, size = 0x4, scoped, tag = 'scoped memory for tpu_custom_call.1']
    #allocation5 [shape = 's32[1]{0}', space=sflag, size = 0x4, scoped, tag = 'scoped memory for tpu_custom_call.1']
    #allocation6 [shape = 'u8[8192]{0}', space=vmem, size = 0x2000, scoped, tag = 'input window, operand 1, single buffered']
    #allocation7 [shape = 's32[1]{0}', space=sflag, size = 0x4, scoped, tag = 'scoped memory for tpu_custom_call.1']
    #allocation8 [shape = 'u8[512]{0}', space=vmem, size = 0x400, scoped, tag = 'output window, operand 0, single buffered']
    %7 = vsyncpa [#allocation4], 0
    %8 = vsyncpa [#allocation7], 0
    %9 = vsyncpa [#allocation5], 0
    // Predicated region
    $region2: #{tpu_custom_call.1} parent=1 // pred_check
      _
    $region3: #{tpu_custom_call.1} parent=1 // pred_check_branch
      %11 = sbr.rel (0) target = $region5
    $region4: #{tpu_custom_call.1} parent=1 // pred_region
      %s12 = sadd.s32 0, 0
      %s13 = smul.u32 2, %s12
      %15 = vsyncadd [#allocation4], 0
      %s16 = smul.addr %s13, 8
      %s17 = scalar_lea.hbm %s0, %s16
      %s18 = sshll.u32 %s17, 4
      %s19 = int_to_ptr.hbm [resolvable:$true] %s18
      %s20 = sshll.u32 [#allocation3], 4
      %s21 = int_to_ptr.vmem [resolvable:$true] %s20
      %26 = dma.hbm_to_vmem [thread:$0]  %s19, 256, %s21, [#allocation4], 128, 128, 8
    $region5: #{tpu_custom_call.1} parent=1 // pred_fallthru
      _
    // Predicated region
    $region6: #{tpu_custom_call.1} parent=1 // pred_check
      _
    $region7: #{tpu_custom_call.1} parent=1 // pred_check_branch
      %28 = sbr.rel (0) target = $region9
    $region8: #{tpu_custom_call.1} parent=1 // pred_region
      %s29 = sadd.s32 0, 0
      %s30 = smul.u32 2, %s29
      %32 = vsyncadd [#allocation7], 0
      %s33 = smul.addr %s30, 8
      %s34 = scalar_lea.hbm %s1, %s33
      %s35 = sshll.u32 %s34, 4
      %s36 = int_to_ptr.hbm [resolvable:$true] %s35
      %s37 = sshll.u32 [#allocation6], 4
      %s38 = int_to_ptr.vmem [resolvable:$true] %s37
      %43 = dma.hbm_to_vmem [thread:$0]  %s36, 256, %s38, [#allocation7], 128, 128, 8
    $region9: #{tpu_custom_call.1} parent=1 // pred_fallthru
      _
    // Predicated region
    $region10: #{tpu_custom_call.1} parent=1 // pred_check
      _
    $region11: #{tpu_custom_call.1} parent=1 // pred_check_branch
      %45 = sbr.rel (0) target = $region13
    $region12: #{tpu_custom_call.1} parent=1 // pred_region
      %47 = dma.done [#allocation4], 256
    $region13: #{tpu_custom_call.1} parent=1 // pred_fallthru
      _
    // Predicated region
    $region14: #{tpu_custom_call.1} parent=1 // pred_check
      _
    $region15: #{tpu_custom_call.1} parent=1 // pred_check_branch
      %49 = sbr.rel (0) target = $region17
    $region16: #{tpu_custom_call.1} parent=1 // pred_region
      %51 = dma.done [#allocation7], 256
    $region17: #{tpu_custom_call.1} parent=1 // pred_fallthru
      _
    %s52 = sadd.s32 0, 0
    %s53 = smul.u32 2, %s52
    %s54 = sadd.s32 0, 0
    %s55 = smul.u32 2, %s54
    %p56 = scmp.eq.s32.totalorder 0, 0
    // Predicated region
    $region18: #{tpu_custom_call.1} parent=1 // pred_check
      %p57 = pneg %p56
    $region19: #{tpu_custom_call.1} parent=1 // pred_check_branch
      %59 = sbr.rel (%p57) target = $region21
    $region20: #{tpu_custom_call.1} parent=1 // pred_region
      %60 = vst [vmem:[#allocation2] sm:$0xff] 0.0
    $region21: #{tpu_custom_call.1} parent=1 // pred_fallthru
      _
    %v61 = vld [vmem:[#allocation3] sm:$0xff]
    %v62 = vld [vmem:[#allocation3 + $0x8] sm:$0xff]
    %v63 = vld [vmem:[#allocation6] sm:$0xff]
    %v64 = vld [vmem:[#allocation6 + $0x8] sm:$0xff]
    %v65 = vsub.f32 %v61, %v63
    %v66 = vsub.f32 %v62, %v64
    %v67 = vmul.f32 %v65, %v65
    %v68 = vmul.f32 %v66, %v66
    %v69 = vld [vmem:[#allocation2] sm:$0xff]
    %v70 = vadd.f32 %v67, %v68
    %v71 = vadd.f32 %v69, %v70
    %72 = vst [vmem:[#allocation2] sm:$0xff] %v71
    // Predicated region
    $region22: #{tpu_custom_call.1} parent=1 // pred_check
      %p73 = pneg %p56
    $region23: #{tpu_custom_call.1} parent=1 // pred_check_branch
      %75 = sbr.rel (%p73) target = $region25
    $region24: #{tpu_custom_call.1} parent=1 // pred_region
      %v76 = vld [vmem:[#allocation2] sm:$0xff]
      %v77 = vrot.slane %v76, 4
      %v78 = vadd.f32 %v76, %v77
      %v79 = vrot.slane %v78, 2
      %v80 = vadd.f32 %v78, %v79
      %v81 = vrot.slane %v80, 1
      %v82 = vadd.f32 %v80, %v81
      %83 = vadd.xlane.f32.xlu0 %v82
      %v84 = vpop.xlane.xlu0 %83
      %vm85 = vcmask 0
      %86 = vst.msk [vmem:[#allocation8] sm:$0x1] %vm85, %v84
    $region25: #{tpu_custom_call.1} parent=1 // pred_fallthru
      _
    // Predicated region
    $region26: #{tpu_custom_call.1} parent=1 // pred_check
      _
    $region27: #{tpu_custom_call.1} parent=1 // pred_check_branch
      %88 = sbr.rel (0) target = $region29
    $region28: #{tpu_custom_call.1} parent=1 // pred_region
      %90 = vsyncadd [#allocation5], 0
      %s92 = sshll.u32 [#allocation8], 4
      %s93 = int_to_ptr.vmem [resolvable:$true] %s92
      %s94 = sshll.u32 %s2, 4
      %s95 = int_to_ptr.hbm [resolvable:$true] %s94
      %97 = dma.vmem_to_hbm [thread:$0]  %s93, 16, %s95, [#allocation5]
    $region29: #{tpu_custom_call.1} parent=1 // pred_fallthru
      _
    // Predicated region
    $region30: #{tpu_custom_call.1} parent=1 // pred_check
      _
    $region31: #{tpu_custom_call.1} parent=1 // pred_check_branch
      %99 = sbr.rel (0) target = $region33
    $region32: #{tpu_custom_call.1} parent=1 // pred_region
      %101 = dma.done [#allocation5], 16
    $region33: #{tpu_custom_call.1} parent=1 // pred_fallthru
      _
    %102 = vsyncpa [#allocation4], 1
    %103 = vsyncpa [#allocation7], 1
    %104 = vsyncpa [#allocation5], 1

</llo_original>
